<compile_context>
chip_gen: v7x
topology: tpu7x:2x2x1
jax: 0.10.0
libtpu: 0.0.40
codegen_flags: <defaults>
</compile_context>

<pallas_src>
import functools

import jax
import jax.numpy as jnp
from jax.experimental import pallas as pl
from jax.experimental.pallas import tpu as pltpu


def _round_up(x, m):
    return ((x + m - 1) // m) * m


def _pick_tile(n, target):
    """Largest clean tile: full extent if small, else `target` if it divides."""
    if n <= target:
        return n
    if n % target == 0:
        return target
    return n  # fallback: single tile (correct; TODO(synk): pad instead)


# ------------------------------ Pallas kernels ------------------------------

def _router_kernel(x_ref, w_ref, o_ref):
    # (tT, H) @ (H, Epad) -> (tT, Epad) logits. bf16 inputs, f32 accumulation.
    o_ref[...] = jnp.dot(x_ref[...], w_ref[...],
                         preferred_element_type=jnp.float32)


def _expert_kernel(xg_ref, g_ref, w1_ref, b1_ref, w2_ref, b2_ref, o_ref):
    """One grid step = (expert e, capacity tile j).

    xg_ref : (tk, H)  bf16   gathered tokens chosen by expert e
    g_ref  : (tk, 1)  f32    routing weight of expert e for those tokens
    w1_ref : (H, M)   bf16   fc1 weight of expert e (resident across tiles)
    b1_ref : (1, M)   f32
    w2_ref : (M, H)   bf16
    b2_ref : (1, H)   f32
    o_ref  : (tk, H)  f32    gate * expert_e(x)
    """
    h = jnp.dot(xg_ref[...], w1_ref[...], preferred_element_type=jnp.float32)
    h = h + b1_ref[...]
    h = jax.nn.gelu(h, approximate=True)                       # EUP tanh path
    o = jnp.dot(h.astype(w2_ref.dtype), w2_ref[...],
                preferred_element_type=jnp.float32)
    o = o + b2_ref[...]
    o_ref[...] = g_ref[...] * o


# --------------------------------- wrapper -----------------------------------

@functools.partial(jax.jit, static_argnames=("top_k",))
def moe_forward(x, router_w, w1, b1, w2, b2, *, top_k):
    """x: (B,S,H) f32. router_w: (H,E) f32. w1: (E,H,M) bf16. b1: (E,M) f32.
    w2: (E,M,H) bf16. b2: (E,H) f32.
    Returns (results (B,S,H), router_logits (T,E), selected_tokens (E,k))."""
    B, S, H = x.shape
    E, _, M = w1.shape
    T = B * S
    k = top_k

    # bf16 activations for the MXU (f32 accumulation happens inside kernels).
    x_bf = x.reshape(T, H).astype(jnp.bfloat16)

    # ---- router logits (Pallas): token-tiled, output lane-padded to 128 ----
    Epad = _round_up(E, 128)
    rw_pad = jnp.pad(router_w.astype(jnp.bfloat16), ((0, 0), (0, Epad - E)))
    tT = _pick_tile(T, 512)
    router_logits_pad = pl.pallas_call(
        _router_kernel,
        out_shape=jax.ShapeDtypeStruct((T, Epad), jnp.float32),
        grid=(T // tT,),
        in_specs=[pl.BlockSpec((tT, H), lambda i: (i, 0)),
                  pl.BlockSpec((H, Epad), lambda i: (0, 0))],
        out_specs=pl.BlockSpec((tT, Epad), lambda i: (i, 0)),
        compiler_params=pltpu.CompilerParams(
            dimension_semantics=("parallel",)),
    )(x_bf, rw_pad)
    router_logits = router_logits_pad[:, :E]                     # (T, E) f32

    # ---- expert-choice routing glue (tiny, data-dependent; plain JAX) ----
    all_probs = jax.nn.softmax(router_logits, axis=-1)            # (T, E)
    weights, selected_tokens = jax.lax.top_k(all_probs.T, k)      # (E, k) each

    # gather each expert's selected tokens: only E*k rows of compute.
    flat_idx = selected_tokens.reshape(-1)                        # (E*k,)
    xg = jnp.take(x_bf, flat_idx, axis=0).reshape(E, k, H)        # (E,k,H) bf16
    gates = weights.astype(jnp.float32)[:, :, None]               # (E,k,1) f32
    b1r = b1[:, None, :]                                          # (E,1,M) f32
    b2r = b2[:, None, :]                                          # (E,1,H) f32

    # capacity tile along the per-expert token axis
    tk = _pick_tile(k, 256)

    cost = pl.CostEstimate(
        flops=2 * E * k * (H * M + M * H),
        transcendentals=E * k * M,
        bytes_accessed=(E * k * H * 2 + E * k * 4
                        + E * (H * M + M * H) * 2
                        + E * (M + H) * 4 + E * k * H * 4))
    vmem_bytes = (2 * (tk * H * 2 + tk * 4 + tk * H * 4)     # xg, gate, out (x2)
                  + 2 * (H * M + M * H) * 2                  # bf16 weights (x2)
                  + 2 * (M + H) * 4 + (4 << 20))             # biases + headroom

    # ---- expert MLPs on the gathered tokens (Pallas) ----
    yg = pl.pallas_call(
        _expert_kernel,
        out_shape=jax.ShapeDtypeStruct((E, k, H), jnp.float32),
        grid=(E, k // tk),
        in_specs=[
            pl.BlockSpec((None, tk, H), lambda e, j: (e, j, 0)),   # gathered x
            pl.BlockSpec((None, tk, 1), lambda e, j: (e, j, 0)),   # gate
            pl.BlockSpec((None, H, M), lambda e, j: (e, 0, 0)),    # w1_e
            pl.BlockSpec((None, 1, M), lambda e, j: (e, 0, 0)),    # b1_e
            pl.BlockSpec((None, M, H), lambda e, j: (e, 0, 0)),    # w2_e
            pl.BlockSpec((None, 1, H), lambda e, j: (e, 0, 0)),    # b2_e
        ],
        out_specs=pl.BlockSpec((None, tk, H), lambda e, j: (e, j, 0)),
        compiler_params=pltpu.CompilerParams(
            dimension_semantics=("parallel", "parallel"),
            vmem_limit_bytes=max(int(vmem_bytes), 32 * 1024 * 1024)),
        cost_estimate=cost,
    )(xg, gates, w1, b1r, w2, b2r)

    # scatter-add each expert's weighted outputs back onto its chosen tokens
    results2d = jnp.zeros((T, H), jnp.float32).at[flat_idx].add(
        yg.reshape(E * k, H))
    results = results2d.reshape(B, S, H).astype(x.dtype)
    return results, router_logits, selected_tokens


# ----------------------------- reference (pure JAX) ---------------------------

def moe_reference(x, router_w, w1, b1, w2, b2, *, top_k):
    """Mirror of the PyTorch loop (same bf16 matmul inputs / f32 accumulation)."""
    B, S, H = x.shape
    E = w1.shape[0]
    T = B * S
    x2d = x.reshape(T, H)
    xb = x2d.astype(jnp.bfloat16)
    logits = jnp.dot(xb, router_w.astype(jnp.bfloat16),
                     preferred_element_type=jnp.float32)
    probs = jax.nn.softmax(logits, axis=-1)
    weights, sel = jax.lax.top_k(probs.T, top_k)                  # (E, k)
    w1b, w2b = w1.astype(jnp.bfloat16), w2.astype(jnp.bfloat16)
    out = jnp.zeros((T, H), jnp.float32)
    for e in range(E):
        xe = xb[sel[e]]
        h = jnp.dot(xe, w1b[e], preferred_element_type=jnp.float32) + b1[e]
        h = jax.nn.gelu(h, approximate=True)
        o = jnp.dot(h.astype(jnp.bfloat16), w2b[e],
                    preferred_element_type=jnp.float32) + b2[e]
        out = out.at[sel[e]].add(weights[e][:, None] * o)
    return out.reshape(B, S, H), logits, sel


# ----------------------------------- main -------------------------------------

if __name__ == "__main__":
    # config: hidden_dim=32, mlp_dim=64, num_experts=4, capacity_factor=2.0,
    # num_groups=2 (batch), tokens_per_group=8 (seq)  ->  top_k = 8
    B, S, H, M, E = 2, 8, 32, 64, 4
    CAPACITY_FACTOR = 2.0
    T = B * S
    top_k_cfg = int(CAPACITY_FACTOR * B * S / E)
    TOP_K = min(top_k_cfg, int(CAPACITY_FACTOR * T / E))          # = 8

    key = jax.random.PRNGKey(0)
    kx, kr, kw1, kb1, kw2, kb2 = jax.random.split(key, 6)
    x = jax.random.normal(kx, (B, S, H), dtype=jnp.float32)
    router_w = jax.random.normal(kr, (H, E), dtype=jnp.float32) * 0.1
    w1 = jax.random.normal(kw1, (E, H, M), dtype=jnp.float32) * 0.1
    b1 = jax.random.normal(kb1, (E, M), dtype=jnp.float32) * 0.01
    w2 = jax.random.normal(kw2, (E, M, H), dtype=jnp.float32) * 0.1
    b2 = jax.random.normal(kb2, (E, H), dtype=jnp.float32) * 0.01

    # cast expert weights to bf16 ONCE (not per forward call)
    w1_bf = w1.astype(jnp.bfloat16)
    w2_bf = w2.astype(jnp.bfloat16)

    results, router_logits, selected_tokens = moe_forward(
        x, router_w, w1_bf, b1, w2_bf, b2, top_k=TOP_K)
    jax.block_until_ready(results)

    ref_results, ref_logits, ref_sel = moe_reference(
        x, router_w, w1, b1, w2, b2, top_k=TOP_K)

    assert results.shape == x.shape
    assert selected_tokens.shape == (E, TOP_K)
    assert jnp.allclose(router_logits, ref_logits, atol=1e-3, rtol=1e-3)
    assert jnp.array_equal(selected_tokens, ref_sel)
    assert jnp.allclose(results, ref_results, atol=5e-3, rtol=5e-3)

    print("KERNEL_OK")
</pallas_src>

<mosaic_0001>
module attributes {stable_mosaic.version = 11 : i64} {
  func.func @_router_kernel(%arg0: i32, %arg1: memref<16x32xbf16, #tpu.memory_space<vmem>>, %arg2: memref<32x128xbf16, #tpu.memory_space<vmem>>, %arg3: memref<16x128xf32, #tpu.memory_space<vmem>>) attributes {dimension_semantics = [#tpu.dimension_semantics<parallel>], iteration_bounds = array<i64: 1>, scalar_prefetch = 0 : i64, scratch_operands = 0 : i64, tpu.core_type = #tpu.core_type<tc>, window_params = [{transform_indices = @transform_0, window_bounds = array<i64: 16, 32>}, {pipeline_mode = #tpu.pipeline_mode<synchronous>, transform_indices = @transform_1, window_bounds = array<i64: 32, 128>}, {transform_indices = @transform_2, window_bounds = array<i64: 16, 128>}]} {
    %c0 = arith.constant 0 : index
    %c0_0 = arith.constant 0 : index
    %0 = vector.load %arg1[%c0, %c0_0] : memref<16x32xbf16, #tpu.memory_space<vmem>>, vector<16x32xbf16>
    %c0_1 = arith.constant 0 : index
    %c0_2 = arith.constant 0 : index
    %1 = vector.load %arg2[%c0_1, %c0_2] : memref<32x128xbf16, #tpu.memory_space<vmem>>, vector<32x128xbf16>
    %cst = arith.constant dense<0.000000e+00> : vector<16x128xf32>
    %2 = tpu.matmul %0, %1, %cst {dimension_numbers = #tpu.dot_dimension_numbers<[1], [0], [0], [1], [0, 0, 1, 1], [], []>} : vector<16x32xbf16>, vector<32x128xbf16>, vector<16x128xf32> -> vector<16x128xf32>
    %c0_3 = arith.constant 0 : index
    %c0_4 = arith.constant 0 : index
    %3 = vector.load %arg3[%c0_3, %c0_4] : memref<16x128xf32, #tpu.memory_space<vmem>>, vector<16x128xf32>
    tpu.vector_store %arg3[%c0_3, %c0_4], %2 {strides = array<i32>} : memref<16x128xf32, #tpu.memory_space<vmem>>, vector<16x128xf32>,
    return
  }
  func.func @transform_0(%arg0: i32) -> (i32, i32) {
    %c0_i32 = arith.constant 0 : i32
    %c0_i32_0 = arith.constant 0 : i32
    return %arg0, %c0_i32 : i32, i32
  }
  func.func @transform_1(%arg0: i32) -> (i32, i32) {
    %c0_i32 = arith.constant 0 : i32
    %c0_i32_0 = arith.constant 0 : i32
    %c0_i32_1 = arith.constant 0 : i32
    return %c0_i32, %c0_i32_0 : i32, i32
  }
  func.func @transform_2(%arg0: i32) -> (i32, i32) {
    %c0_i32 = arith.constant 0 : i32
    %c0_i32_0 = arith.constant 0 : i32
    return %arg0, %c0_i32 : i32, i32
  }
}

module attributes {stable_mosaic.version = 11 : i64} {
  func.func @_expert_kernel(%arg0: i32, %arg1: i32, %arg2: memref<1x8x32xbf16, #tpu.memory_space<vmem>>, %arg3: memref<1x8x1xf32, #tpu.memory_space<vmem>>, %arg4: memref<1x32x64xbf16, #tpu.memory_space<vmem>>, %arg5: memref<1x1x64xf32, #tpu.memory_space<vmem>>, %arg6: memref<1x64x32xbf16, #tpu.memory_space<vmem>>, %arg7: memref<1x1x32xf32, #tpu.memory_space<vmem>>, %arg8: memref<1x8x32xf32, #tpu.memory_space<vmem>>) attributes {dimension_semantics = [#tpu.dimension_semantics<parallel>, #tpu.dimension_semantics<parallel>], iteration_bounds = array<i64: 4, 1>, scalar_prefetch = 0 : i64, scratch_operands = 0 : i64, tpu.core_type = #tpu.core_type<tc>, window_params = [{transform_indices = @transform_0, window_bounds = array<i64: 1, 8, 32>}, {transform_indices = @transform_1, window_bounds = array<i64: 1, 8, 1>}, {transform_indices = @transform_2, window_bounds = array<i64: 1, 32, 64>}, {transform_indices = @transform_3, window_bounds = array<i64: 1, 1, 64>}, {transform_indices = @transform_4, window_bounds = array<i64: 1, 64, 32>}, {transform_indices = @transform_5, window_bounds = array<i64: 1, 1, 32>}, {transform_indices = @transform_6, window_bounds = array<i64: 1, 8, 32>}]} {
    %c0 = arith.constant 0 : index
    %c0_0 = arith.constant 0 : index
    %c0_1 = arith.constant 0 : index
    %0 = vector.load %arg2[%c0, %c0_0, %c0_1] : memref<1x8x32xbf16, #tpu.memory_space<vmem>>, vector<1x8x32xbf16>
    %1 = vector.shape_cast %0 : vector<1x8x32xbf16> to vector<8x32xbf16>
    %c0_2 = arith.constant 0 : index
    %c0_3 = arith.constant 0 : index
    %c0_4 = arith.constant 0 : index
    %2 = vector.load %arg4[%c0_2, %c0_3, %c0_4] : memref<1x32x64xbf16, #tpu.memory_space<vmem>>, vector<1x32x64xbf16>
    %3 = vector.shape_cast %2 : vector<1x32x64xbf16> to vector<32x64xbf16>
    %cst = arith.constant dense<0.000000e+00> : vector<8x64xf32>
    %4 = tpu.matmul %1, %3, %cst {dimension_numbers = #tpu.dot_dimension_numbers<[1], [0], [0], [1], [0, 0, 1, 1], [], []>} : vector<8x32xbf16>, vector<32x64xbf16>, vector<8x64xf32> -> vector<8x64xf32>
    %c0_5 = arith.constant 0 : index
    %c0_6 = arith.constant 0 : index
    %c0_7 = arith.constant 0 : index
    %5 = vector.load %arg5[%c0_5, %c0_6, %c0_7] : memref<1x1x64xf32, #tpu.memory_space<vmem>>, vector<1x1x64xf32>
    %6 = vector.shape_cast %5 : vector<1x1x64xf32> to vector<1x64xf32>
    %7 = vector.broadcast %6 : vector<1x64xf32> to vector<8x64xf32>
    %8 = arith.addf %4, %7 : vector<8x64xf32>
    %9 = arith.mulf %8, %8 : vector<8x64xf32>
    %10 = arith.mulf %8, %9 : vector<8x64xf32>
    %cst_8 = arith.constant 4.471500e-02 : f32
    %11 = vector.broadcast %cst_8 : f32 to vector<8x64xf32>
    %12 = arith.mulf %11, %10 : vector<8x64xf32>
    %13 = arith.addf %8, %12 : vector<8x64xf32>
    %cst_9 = arith.constant 0.797884583 : f32
    %14 = vector.broadcast %cst_9 : f32 to vector<8x64xf32>
    %15 = arith.mulf %14, %13 : vector<8x64xf32>
    %16 = math.tanh %15 : vector<8x64xf32>
    %cst_10 = arith.constant 1.000000e+00 : f32
    %17 = vector.broadcast %cst_10 : f32 to vector<8x64xf32>
    %18 = arith.addf %17, %16 : vector<8x64xf32>
    %cst_11 = arith.constant 5.000000e-01 : f32
    %19 = vector.broadcast %cst_11 : f32 to vector<8x64xf32>
    %20 = arith.mulf %19, %18 : vector<8x64xf32>
    %21 = arith.mulf %8, %20 : vector<8x64xf32>
    %22 = arith.truncf %21 : vector<8x64xf32> to vector<8x64xbf16>
    %c0_12 = arith.constant 0 : index
    %c0_13 = arith.constant 0 : index
    %c0_14 = arith.constant 0 : index
    %23 = vector.load %arg6[%c0_12, %c0_13, %c0_14] : memref<1x64x32xbf16, #tpu.memory_space<vmem>>, vector<1x64x32xbf16>
    %24 = vector.shape_cast %23 : vector<1x64x32xbf16> to vector<64x32xbf16>
    %cst_15 = arith.constant dense<0.000000e+00> : vector<8x32xf32>
    %25 = tpu.matmul %22, %24, %cst_15 {dimension_numbers = #tpu.dot_dimension_numbers<[1], [0], [0], [1], [0, 0, 1, 1], [], []>} : vector<8x64xbf16>, vector<64x32xbf16>, vector<8x32xf32> -> vector<8x32xf32>
    %c0_16 = arith.constant 0 : index
    %c0_17 = arith.constant 0 : index
    %c0_18 = arith.constant 0 : index
    %26 = vector.load %arg7[%c0_16, %c0_17, %c0_18] : memref<1x1x32xf32, #tpu.memory_space<vmem>>, vector<1x1x32xf32>
    %27 = vector.shape_cast %26 : vector<1x1x32xf32> to vector<1x32xf32>
    %28 = vector.broadcast %27 : vector<1x32xf32> to vector<8x32xf32>
    %29 = arith.addf %25, %28 : vector<8x32xf32>
    %c0_19 = arith.constant 0 : index
    %c0_20 = arith.constant 0 : index
    %c0_21 = arith.constant 0 : index
    %30 = vector.load %arg3[%c0_19, %c0_20, %c0_21] : memref<1x8x1xf32, #tpu.memory_space<vmem>>, vector<1x8x1xf32>
    %31 = vector.shape_cast %30 : vector<1x8x1xf32> to vector<8x1xf32>
    %32 = vector.broadcast %31 : vector<8x1xf32> to vector<8x32xf32>
    %33 = arith.mulf %32, %29 : vector<8x32xf32>
    %c0_22 = arith.constant 0 : index
    %c0_23 = arith.constant 0 : index
    %c0_24 = arith.constant 0 : index
    %34 = vector.load %arg8[%c0_22, %c0_23, %c0_24] : memref<1x8x32xf32, #tpu.memory_space<vmem>>, vector<1x8x32xf32>
    %35 = vector.shape_cast %34 : vector<1x8x32xf32> to vector<8x32xf32>
    %36 = vector.shape_cast %33 : vector<8x32xf32> to vector<1x8x32xf32>
    tpu.vector_store %arg8[%c0_22, %c0_23, %c0_24], %36 {strides = array<i32>} : memref<1x8x32xf32, #tpu.memory_space<vmem>>, vector<1x8x32xf32>,
    return
  }
  func.func @transform_0(%arg0: i32, %arg1: i32) -> (i32, i32, i32) {
    %c0_i32 = arith.constant 0 : i32
    %c0_i32_0 = arith.constant 0 : i32
    return %arg0, %arg1, %c0_i32 : i32, i32, i32
  }
  func.func @transform_1(%arg0: i32, %arg1: i32) -> (i32, i32, i32) {
    %c0_i32 = arith.constant 0 : i32
    %c0_i32_0 = arith.constant 0 : i32
    return %arg0, %arg1, %c0_i32 : i32, i32, i32
  }
  func.func @transform_2(%arg0: i32, %arg1: i32) -> (i32, i32, i32) {
    %c0_i32 = arith.constant 0 : i32
    %c0_i32_0 = arith.constant 0 : i32
    %c0_i32_1 = arith.constant 0 : i32
    return %arg0, %c0_i32, %c0_i32_0 : i32, i32, i32
  }
  func.func @transform_3(%arg0: i32, %arg1: i32) -> (i32, i32, i32) {
    %c0_i32 = arith.constant 0 : i32
    %c0_i32_0 = arith.constant 0 : i32
    %c0_i32_1 = arith.constant 0 : i32
    return %arg0, %c0_i32, %c0_i32_0 : i32, i32, i32
  }
  func.func @transform_4(%arg0: i32, %arg1: i32) -> (i32, i32, i32) {
    %c0_i32 = arith.constant 0 : i32
    %c0_i32_0 = arith.constant 0 : i32
    %c0_i32_1 = arith.constant 0 : i32
    return %arg0, %c0_i32, %c0_i32_0 : i32, i32, i32
  }
  func.func @transform_5(%arg0: i32, %arg1: i32) -> (i32, i32, i32) {
    %c0_i32 = arith.constant 0 : i32
    %c0_i32_0 = arith.constant 0 : i32
    %c0_i32_1 = arith.constant 0 : i32
    return %arg0, %c0_i32, %c0_i32_0 : i32, i32, i32
  }
  func.func @transform_6(%arg0: i32, %arg1: i32) -> (i32, i32, i32) {
    %c0_i32 = arith.constant 0 : i32
    %c0_i32_0 = arith.constant 0 : i32
    return %arg0, %arg1, %c0_i32 : i32, i32, i32
  }
}

</mosaic_0001>

<llo_original>
// kernel: moe_forward.2
$region0: #{moe_forward.2}
  #allocation0 [shape = 'u32[]', space=smem, size = 0x4, offset = 0x4, fixed_abs, tag = 'smem constant byte address 0x4 - core index']
  #allocation1 [shape = 'u32[144,128]{1,0:T(1,128)}', space=vmem, size = 0x12000, scoped, tag = 'internal scratch']
  %s0 = inlined_call_operand.vmem [shape: bf16[16,32], index: 0, kind: input, shape index: {}]
  %s1 = inlined_call_operand.vmem [shape: bf16[32,128], index: 1, kind: input, shape index: {}]
  %s2 = inlined_call_operand.vmem [shape: f32[16,128], index: 2, kind: output, shape index: {}]
  %s3 = sld [smem:[#allocation0]]
  $region18: #{moe_forward.2} parent=0
    _
  %s5 = ssub.s32 1, %s3
  %s6 = scalar_select 0, %s5, %s3
  // Predicated region
  $region2: #{moe_forward.2} parent=0 // pred_check
    _
  $region3: #{moe_forward.2} parent=0 // pred_check_branch
    %8 = sbr.rel (0) target = $region5
  $region4: #{moe_forward.2} parent=0 // pred_region
    _
  $region5: #{moe_forward.2} parent=0 // pred_fallthru
    _
  // Predicated region
  $region6: #{moe_forward.2} parent=0 // pred_check
    _
  $region7: #{moe_forward.2} parent=0 // pred_check_branch
    %10 = sbr.rel (0) target = $region9
  $region8: #{moe_forward.2} parent=0 // pred_region
    _
  $region9: #{moe_forward.2} parent=0 // pred_fallthru
    _
  %v12 = vld [vmem:[%s0] sm:$0xf]
  %v13 = vld [vmem:[%s0 + $0x4] sm:$0xf]
  %v14 = vld [vmem:[%s1] sm:$0xf]
  %v15 = vld [vmem:[%s1 + $0x4] sm:$0xf]
  %v16 = vld [vmem:[%s1 + $0x8] sm:$0xf]
  %v17 = vld [vmem:[%s1 + $0xc] sm:$0xf]
  %v20 = vunpack.c.l.b16 %v12
  %v21 = vunpack.c.l.b16 %v13
  %v22 = vpack.c.b16 %v21, %v20
  %v27 = vunpack.c.l.b16 %v14
  %v28 = vunpack.c.l.b16 %v15
  %v29 = vunpack.c.l.b16 %v16
  %v30 = vunpack.c.l.b16 %v17
  %v31 = vpack.c.b16 %v28, %v27
  %v32 = vpack.c.b16 %v30, %v29
  %vm35 = vcmask 261120
  %v37 = vsel %vm35, %v22, 0
  %39 = vmatprep.subr.bf16.mxu0 0
  %40 = vmatpush1.bf16.msra.mxu0 %v31
  %41 = vmatprep.subr.bf16.mxu0 0
  %42 = vmatpush1.bf16.msra.mxu0 %v32
  %43 = vmatprep.subr.bf16.mxu0 0
  %44 = vmatpush1.bf16.msra.mxu0 0
  %45 = vmatprep.subr.bf16.mxu0 0
  %46 = vmatpush1.bf16.msra.mxu0 0
  %47 = vmatprep.subr.bf16.mxu0 0
  %48 = vmatpush1.bf16.msra.mxu0 0
  %49 = vmatprep.subr.bf16.mxu0 0
  %50 = vmatpush1.bf16.msra.mxu0 0
  %51 = vmatprep.subr.bf16.mxu0 0
  %52 = vmatpush1.bf16.msra.mxu0 0
  %53 = vmatprep.subr.bf16.mxu0 0
  %54 = vmatpush1.bf16.msra.mxu0 0
  %55 = vmatprep.subr.bf16.mxu0 0
  %56 = vmatpush1.bf16.msra.mxu0 0
  %57 = vmatprep.subr.bf16.mxu0 0
  %58 = vmatpush1.bf16.msra.mxu0 0
  %59 = vmatprep.subr.bf16.mxu0 0
  %60 = vmatpush1.bf16.msra.mxu0 0
  %61 = vmatprep.subr.bf16.mxu0 0
  %62 = vmatpush1.bf16.msra.mxu0 0
  %63 = vmatprep.subr.bf16.mxu0 0
  %64 = vmatpush1.bf16.msra.mxu0 0
  %65 = vmatprep.subr.bf16.mxu0 0
  %66 = vmatpush1.bf16.msra.mxu0 0
  %67 = vmatprep.subr.bf16.mxu0 0
  %68 = vmatpush1.bf16.msra.mxu0 0
  %69 = vmatprep.subr.bf16.mxu0 0
  %70 = vmatpush1.bf16.msra.mxu0 0
  %71 = vmatprep.mubr.bf16.mxu0 0
  %72 = vmatmul.mubr.bf16.gmra.mrb[0].mxu0 %v37
  %v73 = vpop.f32.mrb[0].mxu0
  %v74 = vadd.f32 0.0, %v73
  %v75 = vpop.f32.mrb[0].mxu0
  %v76 = vpop.f32.mrb[0].mxu0
  %v77 = vadd.f32 0.0, %v76
  %v78 = vpop.f32.mrb[0].mxu0
  %79 = vdwg.mxu0
  %80 = vst [vmem:[%s2] sm:$0xff] %v74
  %81 = vst [vmem:[%s2 + $0x8] sm:$0xff] %v77
  // Predicated region
  $region10: #{moe_forward.2} parent=0 // pred_check
    _
  $region11: #{moe_forward.2} parent=0 // pred_check_branch
    %83 = sbr.rel (0) target = $region13
  $region12: #{moe_forward.2} parent=0 // pred_region
    _
  $region13: #{moe_forward.2} parent=0 // pred_fallthru
    _
  // Predicated region
  $region14: #{moe_forward.2} parent=0 // pred_check
    _
  $region15: #{moe_forward.2} parent=0 // pred_check_branch
    %85 = sbr.rel (0) target = $region17
  $region16: #{moe_forward.2} parent=0 // pred_region
    _
  $region17: #{moe_forward.2} parent=0 // pred_fallthru
    _

// kernel: moe_forward.3
$region0: #{moe_forward.3}
  #allocation0 [shape = 'u32[]', space=smem, size = 0x4, offset = 0x4, fixed_abs, tag = 'smem constant byte address 0x4 - core index']
  #allocation1 [shape = 'u32[144,128]{1,0:T(1,128)}', space=vmem, size = 0x12000, scoped, tag = 'internal scratch']
  %s0 = inlined_call_operand.vmem [shape: bf16[4,8,32], index: 0, kind: input, shape index: {}]
  %s1 = inlined_call_operand.vmem [shape: f32[4,8,1], index: 1, kind: input, shape index: {}]
  %s2 = inlined_call_operand.vmem [shape: bf16[4,32,64], index: 2, kind: input, shape index: {}]
  %s3 = inlined_call_operand.vmem [shape: f32[4,1,64], index: 3, kind: input, shape index: {}]
  %s4 = inlined_call_operand.vmem [shape: bf16[4,64,32], index: 4, kind: input, shape index: {}]
  %s5 = inlined_call_operand.vmem [shape: f32[4,1,32], index: 5, kind: input, shape index: {}]
  %s6 = inlined_call_operand.vmem [shape: f32[4,8,32], index: 6, kind: output, shape index: {}]
  %s7 = sld [smem:[#allocation0]]
  $region57: #{moe_forward.3} parent=0
    _
  %s9 = ssub.s32 1, %s7
  %s10 = scalar_select 0, %s9, %s7
  loop: start=0, step=1, limit=6
  $region2: #{moe_forward.3} parent=0 // loop_pre_header
    _
  $region3: #{moe_forward.3} parent=0 // loop_header
    %s12 = sphi 0, %s16
    %p13 = scmp.ge.s32.totalorder %s12, 6
    %s19 = sphi 0, %s31
    %s20 = sphi 0, %s27
    %s21 = sphi 0, %s19
    %s22 = sphi 0, %s20
    %s23 = sphi 0, %s21
    %s24 = sphi 0, %s22
    %s36 = sphi 0, %s38
    %s39 = sphi 0, %s36
    %s40 = sphi 0, %s39
    %s56 = sphi 0, %s40
    %s64 = sphi 0, %s66
    %s67 = sphi 0, %s64
    %s68 = sphi 0, %s67
    %s84 = sphi 0, %s68
    %s90 = sphi 0, %s92
    %s93 = sphi 0, %s90
    %s94 = sphi 0, %s93
    %s110 = sphi 0, %s94
    %s116 = sphi 0, %s118
    %s119 = sphi 0, %s116
    %s120 = sphi 0, %s119
    %s136 = sphi 0, %s120
    %s142 = sphi 0, %s144
    %s145 = sphi 0, %s142
    %s146 = sphi 0, %s145
    %s162 = sphi 0, %s146
    %s168 = sphi 0, %s170
    %s171 = sphi 0, %s168
    %s172 = sphi 0, %s171
    %s188 = sphi 0, %s172
    %s196 = sphi 0, %s198
    %s199 = sphi 0, %s196
    %s200 = sphi 0, %s199
    %s216 = sphi 0, %s200
  $region4: #{moe_forward.3} parent=0 // loop_header_branch
    %15 = sbr.rel (%p13) target = $region8
  $region5: #{moe_forward.3} parent=0 // loop_body
    %s17 = ssub.s32 %s12, 1
    %s18 = ssub.s32 %s12, 2
    %s25 = sadd.s32 1, %s20
    %p26 = scmp.ge.s32.totalorder %s25, 1
    %s27 = scalar_select %p26, 0, %s25
    %s28 = sadd.s32 1, %s19
    %s29 = scalar_select %p26, %s28, %s19
    %p30 = scmp.ge.s32.totalorder %s29, 4
    %s31 = scalar_select %p30, 0, %s29
    %s32 = ssub.s32 %s19, %s31
    %s33 = ssub.s32 %s20, %s27
    %s34 = sor.u32 %s32, %s33
    %p35 = scmp.eq.s32.totalorder %s34, 0
    %s37 = sadd.s32 %s36, 1
    %s38 = scalar_select %p35, %s36, %s37
    %p41 = pneg %p35
    %p42 = scmp.eq.s32.totalorder %s12, 3
    %p43 = por %p41, %p42
    %p44 = scmp.ne.s32.totalorder %s36, %s39
    %p45 = scmp.eq.s32.totalorder %s12, 0
    %p46 = por %p44, %p45
    %p47 = scmp.ne.s32.totalorder %s36, %s39
    %p48 = scmp.eq.s32.totalorder %s17, 3
    %p49 = por %p47, %p48
    %p50 = scmp.ne.s32.totalorder %s39, %s40
    %p51 = scmp.eq.s32.totalorder %s17, 0
    %p52 = por %p50, %p51
    %p53 = scmp.ne.s32.totalorder %s39, %s40
    %p54 = scmp.eq.s32.totalorder %s18, 3
    %p55 = por %p53, %p54
    %p57 = scmp.ne.s32.totalorder %s40, %s56
    %p58 = scmp.eq.s32.totalorder %s18, 0
    %p59 = por %p57, %p58
    %s60 = ssub.s32 %s19, %s31
    %s61 = ssub.s32 %s20, %s27
    %s62 = sor.u32 %s60, %s61
    %p63 = scmp.eq.s32.totalorder %s62, 0
    %s65 = sadd.s32 %s64, 1
    %s66 = scalar_select %p63, %s64, %s65
    %p69 = pneg %p63
    %p70 = scmp.eq.s32.totalorder %s12, 3
    %p71 = por %p69, %p70
    %p72 = scmp.ne.s32.totalorder %s64, %s67
    %p73 = scmp.eq.s32.totalorder %s12, 0
    %p74 = por %p72, %p73
    %p75 = scmp.ne.s32.totalorder %s64, %s67
    %p76 = scmp.eq.s32.totalorder %s17, 3
    %p77 = por %p75, %p76
    %p78 = scmp.ne.s32.totalorder %s67, %s68
    %p79 = scmp.eq.s32.totalorder %s17, 0
    %p80 = por %p78, %p79
    %p81 = scmp.ne.s32.totalorder %s67, %s68
    %p82 = scmp.eq.s32.totalorder %s18, 3
    %p83 = por %p81, %p82
    %p85 = scmp.ne.s32.totalorder %s68, %s84
    %p86 = scmp.eq.s32.totalorder %s18, 0
    %p87 = por %p85, %p86
    %s88 = ssub.s32 %s19, %s31
    %p89 = scmp.eq.s32.totalorder %s88, 0
    %s91 = sadd.s32 %s90, 1
    %s92 = scalar_select %p89, %s90, %s91
    %p95 = pneg %p89
    %p96 = scmp.eq.s32.totalorder %s12, 3
    %p97 = por %p95, %p96
    %p98 = scmp.ne.s32.totalorder %s90, %s93
    %p99 = scmp.eq.s32.totalorder %s12, 0
    %p100 = por %p98, %p99
    %p101 = scmp.ne.s32.totalorder %s90, %s93
    %p102 = scmp.eq.s32.totalorder %s17, 3
    %p103 = por %p101, %p102
    %p104 = scmp.ne.s32.totalorder %s93, %s94
    %p105 = scmp.eq.s32.totalorder %s17, 0
    %p106 = por %p104, %p105
    %p107 = scmp.ne.s32.totalorder %s93, %s94
    %p108 = scmp.eq.s32.totalorder %s18, 3
    %p109 = por %p107, %p108
    %p111 = scmp.ne.s32.totalorder %s94, %s110
    %p112 = scmp.eq.s32.totalorder %s18, 0
    %p113 = por %p111, %p112
    %s114 = ssub.s32 %s19, %s31
    %p115 = scmp.eq.s32.totalorder %s114, 0
    %s117 = sadd.s32 %s116, 1
    %s118 = scalar_select %p115, %s116, %s117
    %p121 = pneg %p115
    %p122 = scmp.eq.s32.totalorder %s12, 3
    %p123 = por %p121, %p122
    %p124 = scmp.ne.s32.totalorder %s116, %s119
    %p125 = scmp.eq.s32.totalorder %s12, 0
    %p126 = por %p124, %p125
    %p127 = scmp.ne.s32.totalorder %s116, %s119
    %p128 = scmp.eq.s32.totalorder %s17, 3
    %p129 = por %p127, %p128
    %p130 = scmp.ne.s32.totalorder %s119, %s120
    %p131 = scmp.eq.s32.totalorder %s17, 0
    %p132 = por %p130, %p131
    %p133 = scmp.ne.s32.totalorder %s119, %s120
    %p134 = scmp.eq.s32.totalorder %s18, 3
    %p135 = por %p133, %p134
    %p137 = scmp.ne.s32.totalorder %s120, %s136
    %p138 = scmp.eq.s32.totalorder %s18, 0
    %p139 = por %p137, %p138
    %s140 = ssub.s32 %s19, %s31
    %p141 = scmp.eq.s32.totalorder %s140, 0
    %s143 = sadd.s32 %s142, 1
    %s144 = scalar_select %p141, %s142, %s143
    %p147 = pneg %p141
    %p148 = scmp.eq.s32.totalorder %s12, 3
    %p149 = por %p147, %p148
    %p150 = scmp.ne.s32.totalorder %s142, %s145
    %p151 = scmp.eq.s32.totalorder %s12, 0
    %p152 = por %p150, %p151
    %p153 = scmp.ne.s32.totalorder %s142, %s145
    %p154 = scmp.eq.s32.totalorder %s17, 3
    %p155 = por %p153, %p154
    %p156 = scmp.ne.s32.totalorder %s145, %s146
    %p157 = scmp.eq.s32.totalorder %s17, 0
    %p158 = por %p156, %p157
    %p159 = scmp.ne.s32.totalorder %s145, %s146
    %p160 = scmp.eq.s32.totalorder %s18, 3
    %p161 = por %p159, %p160
    %p163 = scmp.ne.s32.totalorder %s146, %s162
    %p164 = scmp.eq.s32.totalorder %s18, 0
    %p165 = por %p163, %p164
    %s166 = ssub.s32 %s19, %s31
    %p167 = scmp.eq.s32.totalorder %s166, 0
    %s169 = sadd.s32 %s168, 1
    %s170 = scalar_select %p167, %s168, %s169
    %p173 = pneg %p167
    %p174 = scmp.eq.s32.totalorder %s12, 3
    %p175 = por %p173, %p174
    %p176 = scmp.ne.s32.totalorder %s168, %s171
    %p177 = scmp.eq.s32.totalorder %s12, 0
    %p178 = por %p176, %p177
    %p179 = scmp.ne.s32.totalorder %s168, %s171
    %p180 = scmp.eq.s32.totalorder %s17, 3
    %p181 = por %p179, %p180
    %p182 = scmp.ne.s32.totalorder %s171, %s172
    %p183 = scmp.eq.s32.totalorder %s17, 0
    %p184 = por %p182, %p183
    %p185 = scmp.ne.s32.totalorder %s171, %s172
    %p186 = scmp.eq.s32.totalorder %s18, 3
    %p187 = por %p185, %p186
    %p189 = scmp.ne.s32.totalorder %s172, %s188
    %p190 = scmp.eq.s32.totalorder %s18, 0
    %p191 = por %p189, %p190
    %s192 = ssub.s32 %s19, %s31
    %s193 = ssub.s32 %s20, %s27
    %s194 = sor.u32 %s192, %s193
    %p195 = scmp.eq.s32.totalorder %s194, 0
    %s197 = sadd.s32 %s196, 1
    %s198 = scalar_select %p195, %s196, %s197
    %p201 = pneg %p195
    %p202 = scmp.eq.s32.totalorder %s12, 3
    %p203 = por %p201, %p202
    %p204 = scmp.ne.s32.totalorder %s196, %s199
    %p205 = scmp.eq.s32.totalorder %s12, 0
    %p206 = por %p204, %p205
    %p207 = scmp.ne.s32.totalorder %s196, %s199
    %p208 = scmp.eq.s32.totalorder %s17, 3
    %p209 = por %p207, %p208
    %p210 = scmp.ne.s32.totalorder %s199, %s200
    %p211 = scmp.eq.s32.totalorder %s17, 0
    %p212 = por %p210, %p211
    %p213 = scmp.ne.s32.totalorder %s199, %s200
    %p214 = scmp.eq.s32.totalorder %s18, 3
    %p215 = por %p213, %p214
    %p217 = scmp.ne.s32.totalorder %s200, %s216
    %p218 = scmp.eq.s32.totalorder %s18, 0
    %p219 = por %p217, %p218
    %p220 = scmp.le.s32.totalorder 1, %s12
    %p221 = scmp.lt.s32.totalorder %s12, 5
    %p222 = pnand %p220, %p221
    %p223 = pneg %p222
    // Predicated region
    $region9: #{moe_forward.3} parent=5 // pred_check
      _
    $region10: #{moe_forward.3} parent=5 // pred_check_branch
      %225 = sbr.rel (%p222) target = $region12
    $region11: #{moe_forward.3} parent=5 // pred_region
      %s226 = ssub.s32 %s12, 1
    $region12: #{moe_forward.3} parent=5 // pred_fallthru
      _
    %p227 = scmp.lt.s32.totalorder %s12, 4
    // Predicated region
    $region13: #{moe_forward.3} parent=5 // pred_check
      %p228 = pneg %p227
    $region14: #{moe_forward.3} parent=5 // pred_check_branch
      %230 = sbr.rel (%p228) target = $region16
    $region15: #{moe_forward.3} parent=5 // pred_region
      // Predicated region
      $region17: #{moe_forward.3} parent=15 // pred_check
        %p231 = pneg %p46
      $region18: #{moe_forward.3} parent=15 // pred_check_branch
        %233 = sbr.rel (%p231) target = $region20
      $region19: #{moe_forward.3} parent=15 // pred_region
        %p234 = scmp.lt.s32.totalorder %s19, 3
        %s235 = scalar_select %p234, %s19, 3
        %p236 = scmp.lt.s32.totalorder %s20, 0
        %s237 = scalar_select %p236, %s20, 0
        %s238 = sadd.s32 %s237, %s235
        %s239 = smul.addr %s238, 4
        %s240 = scalar_lea.vmem %s0, %s239
      $region20: #{moe_forward.3} parent=15 // pred_fallthru
        _
      // Predicated region
      $region21: #{moe_forward.3} parent=15 // pred_check
        %p241 = pneg %p74
      $region22: #{moe_forward.3} parent=15 // pred_check_branch
        %243 = sbr.rel (%p241) target = $region24
      $region23: #{moe_forward.3} parent=15 // pred_region
        %p244 = scmp.lt.s32.totalorder %s19, 3
        %s245 = scalar_select %p244, %s19, 3
        %p246 = scmp.lt.s32.totalorder %s20, 0
        %s247 = scalar_select %p246, %s20, 0
        %s248 = sadd.s32 %s247, %s245
        %s249 = smul.addr %s248, 8
        %s250 = scalar_lea.vmem %s1, %s249
      $region24: #{moe_forward.3} parent=15 // pred_fallthru
        _
      // Predicated region
      $region25: #{moe_forward.3} parent=15 // pred_check
        %p251 = pneg %p100
      $region26: #{moe_forward.3} parent=15 // pred_check_branch
        %253 = sbr.rel (%p251) target = $region28
      $region27: #{moe_forward.3} parent=15 // pred_region
        %p254 = scmp.lt.s32.totalorder %s19, 3
        %s255 = scalar_select %p254, %s19, 3
        %s256 = smul.addr %s255, 4
        %s257 = smul.addr %s256, 4
        %s258 = scalar_lea.vmem %s2, %s257
      $region28: #{moe_forward.3} parent=15 // pred_fallthru
        _
      // Predicated region
      $region29: #{moe_forward.3} parent=15 // pred_check
        %p259 = pneg %p126
      $region30: #{moe_forward.3} parent=15 // pred_check_branch
        %261 = sbr.rel (%p259) target = $region32
      $region31: #{moe_forward.3} parent=15 // pred_region
        %p262 = scmp.lt.s32.totalorder %s19, 3
        %s263 = scalar_select %p262, %s19, 3
        %s264 = scalar_lea.vmem %s3, %s263
      $region32: #{moe_forward.3} parent=15 // pred_fallthru
        _
      // Predicated region
      $region33: #{moe_forward.3} parent=15 // pred_check
        %p265 = pneg %p152
      $region34: #{moe_forward.3} parent=15 // pred_check_branch
        %267 = sbr.rel (%p265) target = $region36
      $region35: #{moe_forward.3} parent=15 // pred_region
        %p268 = scmp.lt.s32.totalorder %s19, 3
        %s269 = scalar_select %p268, %s19, 3
        %s270 = smul.addr %s269, 8
        %s271 = smul.addr %s270, 4
        %s272 = scalar_lea.vmem %s4, %s271
      $region36: #{moe_forward.3} parent=15 // pred_fallthru
        _
      // Predicated region
      $region37: #{moe_forward.3} parent=15 // pred_check
        %p273 = pneg %p178
      $region38: #{moe_forward.3} parent=15 // pred_check_branch
        %275 = sbr.rel (%p273) target = $region40
      $region39: #{moe_forward.3} parent=15 // pred_region
        %p276 = scmp.lt.s32.totalorder %s19, 3
        %s277 = scalar_select %p276, %s19, 3
        %s278 = scalar_lea.vmem %s5, %s277
      $region40: #{moe_forward.3} parent=15 // pred_fallthru
        _
    $region16: #{moe_forward.3} parent=5 // pred_fallthru
      _
    %p279 = scmp.le.s32.totalorder 1, %s12
    %p280 = scmp.lt.s32.totalorder %s12, 5
    %p281 = pnand %p279, %p280
    %p282 = pneg %p281
    // Predicated region
    $region41: #{moe_forward.3} parent=5 // pred_check
      _
    $region42: #{moe_forward.3} parent=5 // pred_check_branch
      %284 = sbr.rel (%p281) target = $region44
    $region43: #{moe_forward.3} parent=5 // pred_region
      %s285 = ssub.s32 %s12, 1
      %p286 = scmp.lt.s32.totalorder %s21, 3
      %s287 = scalar_select %p286, %s21, 3
      %p288 = scmp.lt.s32.totalorder %s22, 0
      %s289 = scalar_select %p288, %s22, 0
      %s290 = sadd.s32 %s289, %s287
      %s291 = smul.addr %s290, 4
      %s292 = scalar_lea.vmem %s0, %s291
      %p293 = pneg %p52
      %p294 = pneg %p49
      %p295 = scmp.lt.s32.totalorder %s21, 3
      %s296 = scalar_select %p295, %s21, 3
      %p297 = scmp.lt.s32.totalorder %s22, 0
      %s298 = scalar_select %p297, %s22, 0
      %s299 = sadd.s32 %s298, %s296
      %s300 = smul.addr %s299, 8
      %s301 = scalar_lea.vmem %s1, %s300
      %p302 = pneg %p80
      %p303 = pneg %p77
      %p304 = scmp.lt.s32.totalorder %s21, 3
      %s305 = scalar_select %p304, %s21, 3
      %s306 = smul.addr %s305, 4
      %s307 = smul.addr %s306, 4
      %s308 = scalar_lea.vmem %s2, %s307
      %p309 = pneg %p106
      %p310 = pneg %p103
      %p311 = scmp.lt.s32.totalorder %s21, 3
      %s312 = scalar_select %p311, %s21, 3
      %s313 = scalar_lea.vmem %s3, %s312
      %p314 = pneg %p132
      %p315 = pneg %p129
      %p316 = scmp.lt.s32.totalorder %s21, 3
      %s317 = scalar_select %p316, %s21, 3
      %s318 = smul.addr %s317, 8
      %s319 = smul.addr %s318, 4
      %s320 = scalar_lea.vmem %s4, %s319
      %p321 = pneg %p158
      %p322 = pneg %p155
      %p323 = scmp.lt.s32.totalorder %s21, 3
      %s324 = scalar_select %p323, %s21, 3
      %s325 = scalar_lea.vmem %s5, %s324
      %p326 = pneg %p184
      %p327 = pneg %p181
      %p328 = pneg %p212
      %p329 = pneg %p209
      %p330 = scmp.lt.s32.totalorder %s21, 3
      %s331 = scalar_select %p330, %s21, 3
      %p332 = scmp.lt.s32.totalorder %s22, 0
      %s333 = scalar_select %p332, %s22, 0
      %s334 = sadd.s32 %s333, %s331
      %s335 = smul.addr %s334, 8
      %s336 = scalar_lea.vmem %s6, %s335
      %p337 = scmp.lt.s32.totalorder %s21, 3
      %s338 = scalar_select %p337, %s21, 3
      %p339 = scmp.lt.s32.totalorder %s22, 0
      %s340 = scalar_select %p339, %s22, 0
      %s341 = sadd.s32 %s340, %s338
      %s342 = smul.addr %s341, 4
      %s343 = scalar_lea.vmem %s0, %s342
      %p344 = scmp.lt.s32.totalorder %s21, 3
      %s345 = scalar_select %p344, %s21, 3
      %p346 = scmp.lt.s32.totalorder %s22, 0
      %s347 = scalar_select %p346, %s22, 0
      %s348 = sadd.s32 %s347, %s345
      %s349 = smul.addr %s348, 8
      %s350 = scalar_lea.vmem %s1, %s349
      %p351 = scmp.lt.s32.totalorder %s21, 3
      %s352 = scalar_select %p351, %s21, 3
      %s353 = smul.addr %s352, 4
      %s354 = smul.addr %s353, 4
      %s355 = scalar_lea.vmem %s2, %s354
      %p356 = scmp.lt.s32.totalorder %s21, 3
      %s357 = scalar_select %p356, %s21, 3
      %s358 = scalar_lea.vmem %s3, %s357
      %p359 = scmp.lt.s32.totalorder %s21, 3
      %s360 = scalar_select %p359, %s21, 3
      %s361 = smul.addr %s360, 8
      %s362 = smul.addr %s361, 4
      %s363 = scalar_lea.vmem %s4, %s362
      %p364 = scmp.lt.s32.totalorder %s21, 3
      %s365 = scalar_select %p364, %s21, 3
      %s366 = scalar_lea.vmem %s5, %s365
      %p367 = scmp.lt.s32.totalorder %s21, 3
      %s368 = scalar_select %p367, %s21, 3
      %p369 = scmp.lt.s32.totalorder %s22, 0
      %s370 = scalar_select %p369, %s22, 0
      %s371 = sadd.s32 %s370, %s368
      %s372 = smul.addr %s371, 8
      %s373 = scalar_lea.vmem %s6, %s372
      %v375 = vld [vmem:[%s343] sm:$0xf]
      %v376 = vld [vmem:[%s355] sm:$0xf]
      %v377 = vld [vmem:[%s355 + $0x4] sm:$0xf]
      %v378 = vld [vmem:[%s355 + $0x8] sm:$0xf]
      %v379 = vld [vmem:[%s355 + $0xc] sm:$0xf]
      %v380 = vld [vmem:[%s358] sm:$0x1]
      %v382 = vlaneseq
      %v383 = vshrl.u32 %v382, 7
      %v384 = vsub.s32 0, %v383
      %v385 = vrot.slane %v380, %v384
      %v391 = vunpack.c.l.b16 %v376
      %v392 = vunpack.c.l.b16 %v377
      %v393 = vunpack.c.l.b16 %v378
      %v394 = vunpack.c.l.b16 %v379
      %v395 = vpack.c.b16 %v392, %v391
      %v396 = vpack.c.b16 %v394, %v393
      %vm399 = vcmask 261120
      %v401 = vsel %vm399, %v375, 0
      %403 = vmatprep.subr.bf16.mxu0 0
      %404 = vmatpush1.bf16.msra.mxu0 %v395
      %405 = vmatprep.subr.bf16.mxu0 0
      %406 = vmatpush1.bf16.msra.mxu0 %v396
      %407 = vmatprep.subr.bf16.mxu0 0
      %408 = vmatpush1.bf16.msra.mxu0 0
      %409 = vmatprep.subr.bf16.mxu0 0
      %410 = vmatpush1.bf16.msra.mxu0 0
      %411 = vmatprep.subr.bf16.mxu0 0
      %412 = vmatpush1.bf16.msra.mxu0 0
      %413 = vmatprep.subr.bf16.mxu0 0
      %414 = vmatpush1.bf16.msra.mxu0 0
      %415 = vmatprep.subr.bf16.mxu0 0
      %416 = vmatpush1.bf16.msra.mxu0 0
      %417 = vmatprep.subr.bf16.mxu0 0
      %418 = vmatpush1.bf16.msra.mxu0 0
      %419 = vmatprep.subr.bf16.mxu0 0
      %420 = vmatpush1.bf16.msra.mxu0 0
      %421 = vmatprep.subr.bf16.mxu0 0
      %422 = vmatpush1.bf16.msra.mxu0 0
      %423 = vmatprep.subr.bf16.mxu0 0
      %424 = vmatpush1.bf16.msra.mxu0 0
      %425 = vmatprep.subr.bf16.mxu0 0
      %426 = vmatpush1.bf16.msra.mxu0 0
      %427 = vmatprep.subr.bf16.mxu0 0
      %428 = vmatpush1.bf16.msra.mxu0 0
      %429 = vmatprep.subr.bf16.mxu0 0
      %430 = vmatpush1.bf16.msra.mxu0 0
      %431 = vmatprep.subr.bf16.mxu0 0
      %432 = vmatpush1.bf16.msra.mxu0 0
      %433 = vmatprep.subr.bf16.mxu0 0
      %434 = vmatpush1.bf16.msra.mxu0 0
      %435 = vmatprep.mubr.bf16.mxu0 0
      %436 = vmatmul.mubr.bf16.gmra.mrb[0].mxu0 %v401
      %v437 = vpop.f32.mrb[0].mxu0
      %v438 = vadd.f32 %v385, %v437
      %v439 = vpop.f32.mrb[0].mxu0
      %v440 = vpop.f32.mrb[0].mxu0
      %v441 = vpop.f32.mrb[0].mxu0
      %442 = vdwg.mxu0
      %v443 = vmul.f32 %v438, %v438
      %v444 = vmul.f32 %v438, %v443
      %v445 = vmul.f32 %v444, 0.044715
      %v446 = vadd.f32 %v438, %v445
      %v447 = vmul.f32 %v446, 0.7978846
      %v448 = vtanh.pop %v447
      %v449 = vadd.f32 %v448, 1.0
      %v450 = vmul.f32 %v449, 0.5
      %v451 = vmul.f32 %v438, %v450
      %v452 = vpack.c.bf16 %v451, %v451
      %v453 = vld [vmem:[%s363] sm:$0xf]
      %v454 = vld [vmem:[%s363 + $0x4] sm:$0xf]
      %v455 = vld [vmem:[%s363 + $0x8] sm:$0xf]
      %v456 = vld [vmem:[%s363 + $0xc] sm:$0xf]
      %v457 = vld [vmem:[%s363 + $0x10] sm:$0xf]
      %v458 = vld [vmem:[%s363 + $0x14] sm:$0xf]
      %v459 = vld [vmem:[%s363 + $0x18] sm:$0xf]
      %v460 = vld [vmem:[%s363 + $0x1c] sm:$0xf]
      %v461 = vld [vmem:[%s366] sm:$0x1]
      %v463 = vlaneseq
      %v464 = vshrl.u32 %v463, 7
      %v465 = vsub.s32 0, %v464
      %v466 = vrot.slane %v461, %v465
      %v476 = vunpack.c.l.b16 %v453
      %v477 = vunpack.c.l.b16 %v454
      %v478 = vunpack.c.l.b16 %v455
      %v479 = vunpack.c.l.b16 %v456
      %v480 = vunpack.c.l.b16 %v457
      %v481 = vunpack.c.l.b16 %v458
      %v482 = vunpack.c.l.b16 %v459
      %v483 = vunpack.c.l.b16 %v460
      %v484 = vpack.c.b16 %v477, %v476
      %v485 = vpack.c.b16 %v479, %v478
      %v486 = vpack.c.b16 %v481, %v480
      %v487 = vpack.c.b16 %v483, %v482
      %vm492 = vcmask 523264
      %v494 = vsel %vm492, %v452, 0
      %496 = vmatprep.subr.bf16.mxu0 0
      %497 = vmatpush1.bf16.msra.mxu0 %v484
      %498 = vmatprep.subr.bf16.mxu0 0
      %499 = vmatpush1.bf16.msra.mxu0 %v485
      %500 = vmatprep.subr.bf16.mxu0 0
      %501 = vmatpush1.bf16.msra.mxu0 %v486
      %502 = vmatprep.subr.bf16.mxu0 0
      %503 = vmatpush1.bf16.msra.mxu0 %v487
      %504 = vmatprep.subr.bf16.mxu0 0
      %505 = vmatpush1.bf16.msra.mxu0 0
      %506 = vmatprep.subr.bf16.mxu0 0
      %507 = vmatpush1.bf16.msra.mxu0 0
      %508 = vmatprep.subr.bf16.mxu0 0
      %509 = vmatpush1.bf16.msra.mxu0 0
      %510 = vmatprep.subr.bf16.mxu0 0
      %511 = vmatpush1.bf16.msra.mxu0 0
      %512 = vmatprep.subr.bf16.mxu0 0
      %513 = vmatpush1.bf16.msra.mxu0 0
      %514 = vmatprep.subr.bf16.mxu0 0
      %515 = vmatpush1.bf16.msra.mxu0 0
      %516 = vmatprep.subr.bf16.mxu0 0
      %517 = vmatpush1.bf16.msra.mxu0 0
      %518 = vmatprep.subr.bf16.mxu0 0
      %519 = vmatpush1.bf16.msra.mxu0 0
      %520 = vmatprep.subr.bf16.mxu0 0
      %521 = vmatpush1.bf16.msra.mxu0 0
      %522 = vmatprep.subr.bf16.mxu0 0
      %523 = vmatpush1.bf16.msra.mxu0 0
      %524 = vmatprep.subr.bf16.mxu0 0
      %525 = vmatpush1.bf16.msra.mxu0 0
      %526 = vmatprep.subr.bf16.mxu0 0
      %527 = vmatpush1.bf16.msra.mxu0 0
      %528 = vmatprep.mubr.bf16.mxu0 0
      %529 = vmatmul.mubr.bf16.gmra.mrb[0].mxu0 %v494
      %v530 = vpop.f32.mrb[0].mxu0
      %v531 = vadd.f32 %v466, %v530
      %v532 = vpop.f32.mrb[0].mxu0
      %v533 = vpop.f32.mrb[0].mxu0
      %v534 = vpop.f32.mrb[0].mxu0
      %535 = vdwg.mxu0
      %v536 = vld [vmem:[%s350] sm:$0xff]
      %538 = vset.pattern.permute.xlu0 0
      %539 = vperm.xlu0 %538, %v536
      %v540 = vpop.permute.xlu0 %539
      %v542 = vmul.f32 %v540, %v531
      %543 = vst.msk [vmem:[%s373] sm:$0xff] %vm399, %v542
      %p544 = scmp.lt.s32.totalorder %s21, 3
      %s545 = scalar_select %p544, %s21, 3
      %p546 = scmp.lt.s32.totalorder %s22, 0
      %s547 = scalar_select %p546, %s22, 0
      %s548 = sadd.s32 %s547, %s545
      %s549 = smul.addr %s548, 8
      %s550 = scalar_lea.vmem %s6, %s549
      // Predicated region
      $region45: #{moe_forward.3} parent=43 // pred_check
        %p551 = pneg %p209
      $region46: #{moe_forward.3} parent=43 // pred_check_branch
        %553 = sbr.rel (%p551) target = $region48
      $region47: #{moe_forward.3} parent=43 // pred_region
        _
      $region48: #{moe_forward.3} parent=43 // pred_fallthru
        _
    $region44: #{moe_forward.3} parent=5 // pred_fallthru
      _
    %p554 = scmp.le.s32.totalorder 2, %s12
    // Predicated region
    $region49: #{moe_forward.3} parent=5 // pred_check
      %p555 = pneg %p554
    $region50: #{moe_forward.3} parent=5 // pred_check_branch
      %557 = sbr.rel (%p555) target = $region52
    $region51: #{moe_forward.3} parent=5 // pred_region
      %s558 = ssub.s32 %s12, 2
      // Predicated region
      $region53: #{moe_forward.3} parent=51 // pred_check
        %p559 = pneg %p215
      $region54: #{moe_forward.3} parent=51 // pred_check_branch
        %561 = sbr.rel (%p559) target = $region56
      $region55: #{moe_forward.3} parent=51 // pred_region
        %p562 = scmp.lt.s32.totalorder %s23, 3
        %s563 = scalar_select %p562, %s23, 3
        %p564 = scmp.lt.s32.totalorder %s24, 0
        %s565 = scalar_select %p564, %s24, 0
        %s566 = sadd.s32 %s565, %s563
        %s567 = smul.addr %s566, 8
        %s568 = scalar_lea.vmem %s6, %s567
      $region56: #{moe_forward.3} parent=51 // pred_fallthru
        _
    $region52: #{moe_forward.3} parent=5 // pred_fallthru
      _
  $region6: #{moe_forward.3} parent=0 // loop_footer
    %s16 = sadd.s32 1, %s12
  $region7: #{moe_forward.3} parent=0 // loop_footer_branch
    %11 = sbr.rel target = $region3
  $region8: #{moe_forward.3} parent=0 // loop_exit
    _

</llo_original>
